<compile_context>
chip_gen: v5e
topology: v5e:2x2
jax: 0.10.0
libtpu: 0.0.40
codegen_flags: <defaults>
</compile_context>

<pallas_src>
import numpy as np
import jax
import jax.numpy as jnp
from jax.experimental import pallas as pl
from jax.experimental.pallas import tpu as pltpu


# ---------------------------------------------------------------------------
# Kernel: fused Linear -> ReLU -> Linear -> ReLU -> (row-dot + bias)
# ---------------------------------------------------------------------------
def reward_mlp_kernel(x_ref, w0_ref, w1_ref, pk_ref, out_ref):
    """x_ref:(TB, D_in)  w0_ref:(D_in, H)  w1_ref:(H, H)
    pk_ref:(4, H) packed rows = [b0, b1, w2_row, [b2, 0, ...]]
    out_ref:(TB, 1)"""
    x = x_ref[...]                                   # (TB, D_in) f32
    pk = pk_ref[...]                                 # (4, H) single tiny load
    b0 = pk[0:1, :]                                  # (1, H)
    b1 = pk[1:2, :]                                  # (1, H)
    w2 = pk[2:3, :]                                  # (1, H)  final-layer weights
    b2 = pk[3:4, 0:1]                                # (1, 1)  final-layer bias

    h0 = jnp.dot(x, w0_ref[...], preferred_element_type=jnp.float32) + b0
    h0 = jnp.maximum(h0, 0.0)                        # ReLU (VPU)
    h1 = jnp.dot(h0, w1_ref[...], preferred_element_type=jnp.float32) + b1
    h1 = jnp.maximum(h1, 0.0)                        # ReLU (VPU)
    # N=1 output: VPU multiply + XLU lane-reduction instead of an MXU pass.
    out_ref[...] = jnp.sum(h1 * w2, axis=-1, keepdims=True) + b2


# ---------------------------------------------------------------------------
# One-time parameter preparation (no per-call transposes / packing)
# ---------------------------------------------------------------------------
def prepare_reward_params(params):
    """params: [(W0,b0),(W1,b1),(W2,b2)] in PyTorch (out_features, in_features)
    convention. Returns (W0^T, W1^T, packed) to be reused across calls."""
    (w0, b0), (w1, b1), (w2, b2) = params
    hidden = w0.shape[0]
    w0t = jnp.asarray(w0, jnp.float32).T             # (D_in, H)
    w1t = jnp.asarray(w1, jnp.float32).T             # (H, H)
    packed = jnp.zeros((4, hidden), jnp.float32)
    packed = packed.at[0].set(jnp.asarray(b0, jnp.float32))
    packed = packed.at[1].set(jnp.asarray(b1, jnp.float32))
    packed = packed.at[2].set(jnp.asarray(w2, jnp.float32)[0])   # (H,)
    packed = packed.at[3, 0].set(jnp.asarray(b2, jnp.float32)[0])
    return w0t, w1t, packed


# ---------------------------------------------------------------------------
# pallas_call wrapper: batch-gridded, weights resident, x prefetch pipelined
# ---------------------------------------------------------------------------
def reward_mlp_pallas(x, prepared, block_b=None):
    """x: (B, x_cols) f32 where the first D_in columns are the MLP input
    (x_cols may exceed D_in -- the BlockSpec window reads only D_in lanes)."""
    w0t, w1t, packed = prepared
    d_in, hidden = w0t.shape
    B, x_cols = x.shape
    assert x_cols >= d_in, "input has fewer features than the MLP expects"

    # The x block last-dim must be a multiple of 128 or equal the full extent.
    if x_cols != d_in and d_in % 128 != 0:
        x = x[:, :d_in]          # fallback copy; only hit at tiny/unaligned shapes
        x_cols = d_in

    # Batch tile: multiple of 8 (sublane) or the full batch.
    tb = block_b if block_b is not None else (256 if B > 256 else B)
    tb = min(tb, B)
    if tb != B and tb % 8 != 0:
        tb = B
    grid = (pl.cdiv(B, tb),)

    # VMEM budget (double-buffered x/out + resident weights + intermediates),
    # clamped so it is safe on v7x's smaller (64 MiB) VMEM.
    vmem_need = 4 * (2 * tb * d_in + 2 * tb + 2 * tb * hidden
                     + 2 * (d_in * hidden + hidden * hidden + 4 * hidden))
    vmem_limit = int(min(max(vmem_need + (2 << 20), 16 << 20), 64 << 20))

    return pl.pallas_call(
        reward_mlp_kernel,
        out_shape=jax.ShapeDtypeStruct((B, 1), jnp.float32),
        grid_spec=pltpu.PrefetchScalarGridSpec(
            num_scalar_prefetch=0,
            grid=grid,
            in_specs=[
                pl.BlockSpec((tb, d_in), lambda i: (i, 0)),       # x: tiled batch
                pl.BlockSpec((d_in, hidden), lambda i: (0, 0)),   # W0^T: resident
                pl.BlockSpec((hidden, hidden), lambda i: (0, 0)), # W1^T: resident
                pl.BlockSpec((4, hidden), lambda i: (0, 0)),      # packed b0/b1/w2/b2
            ],
            out_specs=pl.BlockSpec((tb, 1), lambda i: (i, 0)),
        ),
        compiler_params=pltpu.CompilerParams(
            dimension_semantics=("parallel",),        # v7x: shard batch across 2 TCs
            vmem_limit_bytes=vmem_limit,
        ),
    )(x, w0t, w1t, packed)


def observation_reward_forward(h, prepared, block_b=None):
    """Mirrors the reward branch of ObservationRewardModel.forward:
        reward_ = self.reward_model(h[:, :4])
    h: (B, C_latent, Hs, Ws) encoder output (C_latent >= 4)."""
    # TODO(synk): AutoEncoderKL observation model (encoder/decoder/KL/GAN loss)
    # source is not provided, so obs_, pz_obs and z are not reproduced here.
    B, C, Hs, Ws = h.shape
    w0t, _, _ = prepared
    d_in = w0t.shape[0]
    assert d_in == 4 * Hs * Ws, "reward MLP in_features != prod(latent_dims)"
    # Free metadata reshape (contiguous trailing dims): the first 4*Hs*Ws
    # columns of h.reshape(B, C*Hs*Ws) ARE h[:, :4].reshape(B, -1), so no
    # HBM-to-HBM slice copy is needed -- the kernel BlockSpec reads only them.
    h_flat = h.reshape(B, C * Hs * Ws)
    return reward_mlp_pallas(h_flat, prepared, block_b=block_b)


def _linear_init(kw, kb, fan_in, fan_out):
    # Deterministic init mimicking nn.Linear's U(-1/sqrt(fan_in), 1/sqrt(fan_in))
    bound = 1.0 / float(np.sqrt(fan_in))
    w = jax.random.uniform(kw, (fan_out, fan_in), jnp.float32, -bound, bound)
    b = jax.random.uniform(kb, (fan_out,), jnp.float32, -bound, bound)
    return w, b


if __name__ == "__main__":
    key = jax.random.PRNGKey(0)
    # AutoEncoderKL-style latent: 8 channels (mean+logvar), 16x16 spatial.
    B, C, Hs, Ws = 16, 8, 16, 16
    hidden = 32                        # mlp hid = [32]  ->  Lin/ReLU/Lin/ReLU/Lin
    d_in = 4 * Hs * Ws                 # np.prod(latent_dims) with 4 mean channels

    k_h, k0, kb0, k1, kb1, k2, kb2 = jax.random.split(key, 7)
    h = jax.random.normal(k_h, (B, C, Hs, Ws), jnp.float32)

    params = [
        _linear_init(k0, kb0, d_in, hidden),
        _linear_init(k1, kb1, hidden, hidden),
        _linear_init(k2, kb2, hidden, 1),
    ]
    prepared = prepare_reward_params(params)   # once at init, reused every call

    reward_ = observation_reward_forward(h, prepared, block_b=8)  # grid of 2 steps
    jax.block_until_ready(reward_)

    # Pure-JAX reference of the same MLP for a correctness check.
    x_ref = h[:, :4].reshape(B, -1)
    ref = x_ref
    for i, (w, b) in enumerate(params):
        ref = ref @ w.T + b
        if i < len(params) - 1:
            ref = jnp.maximum(ref, 0.0)

    assert reward_.shape == (B, 1)
    assert np.allclose(np.asarray(reward_), np.asarray(ref), atol=1e-5), (
        "Pallas reward head mismatch vs reference")

    print("KERNEL_OK")
</pallas_src>

<mosaic_0001>
module attributes {stable_mosaic.version = 11 : i64} {
  func.func @reward_mlp_kernel(%arg0: i32, %arg1: memref<8x1024xf32, #tpu.memory_space<vmem>>, %arg2: memref<1024x32xf32, #tpu.memory_space<vmem>>, %arg3: memref<32x32xf32, #tpu.memory_space<vmem>>, %arg4: memref<4x32xf32, #tpu.memory_space<vmem>>, %arg5: memref<8x1xf32, #tpu.memory_space<vmem>>) attributes {dimension_semantics = [#tpu.dimension_semantics<parallel>], iteration_bounds = array<i64: 2>, scalar_prefetch = 0 : i64, scratch_operands = 0 : i64, tpu.core_type = #tpu.core_type<tc>, window_params = [{transform_indices = @transform_0, window_bounds = array<i64: 8, 1024>}, {pipeline_mode = #tpu.pipeline_mode<synchronous>, transform_indices = @transform_1, window_bounds = array<i64: 1024, 32>}, {pipeline_mode = #tpu.pipeline_mode<synchronous>, transform_indices = @transform_2, window_bounds = array<i64: 32, 32>}, {pipeline_mode = #tpu.pipeline_mode<synchronous>, transform_indices = @transform_3, window_bounds = array<i64: 4, 32>}, {transform_indices = @transform_4, window_bounds = array<i64: 8, 1>}]} {
    %c0 = arith.constant 0 : index
    %c0_0 = arith.constant 0 : index
    %0 = vector.load %arg1[%c0, %c0_0] : memref<8x1024xf32, #tpu.memory_space<vmem>>, vector<8x1024xf32>
    %c0_1 = arith.constant 0 : index
    %c0_2 = arith.constant 0 : index
    %1 = vector.load %arg4[%c0_1, %c0_2] : memref<4x32xf32, #tpu.memory_space<vmem>>, vector<4x32xf32>
    %2 = vector.extract_strided_slice %1 {offsets = [0, 0], sizes = [1, 32], strides = [1, 1]} : vector<4x32xf32> to vector<1x32xf32>
    %3 = vector.extract_strided_slice %1 {offsets = [1, 0], sizes = [1, 32], strides = [1, 1]} : vector<4x32xf32> to vector<1x32xf32>
    %4 = vector.extract_strided_slice %1 {offsets = [2, 0], sizes = [1, 32], strides = [1, 1]} : vector<4x32xf32> to vector<1x32xf32>
    %5 = vector.extract_strided_slice %1 {offsets = [3, 0], sizes = [1, 1], strides = [1, 1]} : vector<4x32xf32> to vector<1x1xf32>
    %c0_3 = arith.constant 0 : index
    %c0_4 = arith.constant 0 : index
    %6 = vector.load %arg2[%c0_3, %c0_4] : memref<1024x32xf32, #tpu.memory_space<vmem>>, vector<1024x32xf32>
    %cst = arith.constant dense<0.000000e+00> : vector<8x32xf32>
    %7 = tpu.matmul %0, %6, %cst {dimension_numbers = #tpu.dot_dimension_numbers<[1], [0], [0], [1], [0, 0, 1, 1], [], []>} : vector<8x1024xf32>, vector<1024x32xf32>, vector<8x32xf32> -> vector<8x32xf32>
    %8 = vector.broadcast %2 : vector<1x32xf32> to vector<8x32xf32>
    %9 = arith.addf %7, %8 : vector<8x32xf32>
    %cst_5 = arith.constant 0.000000e+00 : f32
    %10 = vector.broadcast %cst_5 : f32 to vector<8x32xf32>
    %11 = arith.maximumf %9, %10 : vector<8x32xf32>
    %c0_6 = arith.constant 0 : index
    %c0_7 = arith.constant 0 : index
    %12 = vector.load %arg3[%c0_6, %c0_7] : memref<32x32xf32, #tpu.memory_space<vmem>>, vector<32x32xf32>
    %cst_8 = arith.constant dense<0.000000e+00> : vector<8x32xf32>
    %13 = tpu.matmul %11, %12, %cst_8 {dimension_numbers = #tpu.dot_dimension_numbers<[1], [0], [0], [1], [0, 0, 1, 1], [], []>} : vector<8x32xf32>, vector<32x32xf32>, vector<8x32xf32> -> vector<8x32xf32>
    %14 = vector.broadcast %3 : vector<1x32xf32> to vector<8x32xf32>
    %15 = arith.addf %13, %14 : vector<8x32xf32>
    %cst_9 = arith.constant 0.000000e+00 : f32
    %16 = vector.broadcast %cst_9 : f32 to vector<8x32xf32>
    %17 = arith.maximumf %15, %16 : vector<8x32xf32>
    %18 = vector.broadcast %4 : vector<1x32xf32> to vector<8x32xf32>
    %19 = arith.mulf %17, %18 : vector<8x32xf32>
    %cst_10 = arith.constant dense<0.000000e+00> : vector<8xf32>
    %20 = vector.multi_reduction <add>, %19, %cst_10 [1] : vector<8x32xf32> to vector<8xf32>
    %21 = vector.shape_cast %20 : vector<8xf32> to vector<8x1xf32>
    %22 = vector.broadcast %5 : vector<1x1xf32> to vector<8x1xf32>
    %23 = arith.addf %21, %22 : vector<8x1xf32>
    %c0_11 = arith.constant 0 : index
    %c0_12 = arith.constant 0 : index
    %24 = vector.load %arg5[%c0_11, %c0_12] : memref<8x1xf32, #tpu.memory_space<vmem>>, vector<8x1xf32>
    tpu.vector_store %arg5[%c0_11, %c0_12], %23 {strides = array<i32>} : memref<8x1xf32, #tpu.memory_space<vmem>>, vector<8x1xf32>,
    return
  }
  func.func @transform_0(%arg0: i32) -> (i32, i32) {
    %c0_i32 = arith.constant 0 : i32
    %c0_i32_0 = arith.constant 0 : i32
    return %arg0, %c0_i32 : i32, i32
  }
  func.func @transform_1(%arg0: i32) -> (i32, i32) {
    %c0_i32 = arith.constant 0 : i32
    %c0_i32_0 = arith.constant 0 : i32
    %c0_i32_1 = arith.constant 0 : i32
    return %c0_i32, %c0_i32_0 : i32, i32
  }
  func.func @transform_2(%arg0: i32) -> (i32, i32) {
    %c0_i32 = arith.constant 0 : i32
    %c0_i32_0 = arith.constant 0 : i32
    %c0_i32_1 = arith.constant 0 : i32
    return %c0_i32, %c0_i32_0 : i32, i32
  }
  func.func @transform_3(%arg0: i32) -> (i32, i32) {
    %c0_i32 = arith.constant 0 : i32
    %c0_i32_0 = arith.constant 0 : i32
    %c0_i32_1 = arith.constant 0 : i32
    return %c0_i32, %c0_i32_0 : i32, i32
  }
  func.func @transform_4(%arg0: i32) -> (i32, i32) {
    %c0_i32 = arith.constant 0 : i32
    %c0_i32_0 = arith.constant 0 : i32
    return %arg0, %c0_i32 : i32, i32
  }
}

</mosaic_0001>

<llo_original>
// kernel: tpu_custom_call.1
$region0: #{tpu_custom_call.1}
  #allocation0 [shape = 'u32[]', space=smem, size = 0x4, offset = 0x4, fixed_abs, tag = 'smem constant byte address 0x4 - core index']
  #allocation1 [shape = 'u32[72,128]{1,0:T(1,128)}', space=vmem, size = 0x9000, scoped, tag = 'internal scratch']
  %s0 = inlined_call_operand.vmem [shape: f32[16,2048], index: 0, kind: input, shape index: {}]
  %s1 = inlined_call_operand.vmem [shape: f32[1024,32], index: 1, kind: input, shape index: {}]
  %s2 = inlined_call_operand.vmem [shape: f32[32,32], index: 2, kind: input, shape index: {}]
  %s3 = inlined_call_operand.vmem [shape: f32[4,32], index: 3, kind: input, shape index: {}]
  %s4 = inlined_call_operand.vmem [shape: f32[16,1], index: 4, kind: output, shape index: {}]
  %s5 = sld [smem:[#allocation0]]
  $region49: #{tpu_custom_call.1} parent=0
    _
  %s7 = ssub.s32 1, %s5
  %s8 = scalar_select 0, %s7, %s5
  loop: start=0, step=1, limit=4
  $region2: #{tpu_custom_call.1} parent=0 // loop_pre_header
    _
  $region3: #{tpu_custom_call.1} parent=0 // loop_header
    %s10 = sphi 0, %s14
    %p11 = scmp.ge.s32.totalorder %s10, 4
    %s20 = sphi 0, %s22
    %s23 = sphi 0, %s20
    %s24 = sphi 0, %s23
    %s40 = sphi 0, %s24
    %s44 = sphi 0, %s44
    %s46 = sphi 0, %s44
    %s47 = sphi 0, %s46
    %s61 = sphi 0, %s47
    %s65 = sphi 0, %s65
    %s67 = sphi 0, %s65
    %s68 = sphi 0, %s67
    %s82 = sphi 0, %s68
    %s86 = sphi 0, %s86
    %s88 = sphi 0, %s86
    %s89 = sphi 0, %s88
    %s103 = sphi 0, %s89
    %s109 = sphi 0, %s111
    %s112 = sphi 0, %s109
    %s113 = sphi 0, %s112
    %s129 = sphi 0, %s113
  $region4: #{tpu_custom_call.1} parent=0 // loop_header_branch
    %13 = sbr.rel (%p11) target = $region8
  $region5: #{tpu_custom_call.1} parent=0 // loop_body
    %s15 = ssub.s32 %s10, 1
    %s16 = ssub.s32 %s10, 2
    %s17 = sadd.s32 %s10, 1
    %s18 = ssub.s32 %s10, %s17
    %p19 = scmp.eq.s32.totalorder %s18, 0
    %s21 = sadd.s32 %s20, 1
    %s22 = scalar_select %p19, %s20, %s21
    %p25 = pneg %p19
    %p26 = scmp.eq.s32.totalorder %s10, 1
    %p27 = por %p25, %p26
    %p28 = scmp.ne.s32.totalorder %s20, %s23
    %p29 = scmp.eq.s32.totalorder %s10, 0
    %p30 = por %p28, %p29
    %p31 = scmp.ne.s32.totalorder %s20, %s23
    %p32 = scmp.eq.s32.totalorder %s15, 1
    %p33 = por %p31, %p32
    %p34 = scmp.ne.s32.totalorder %s23, %s24
    %p35 = scmp.eq.s32.totalorder %s15, 0
    %p36 = por %p34, %p35
    %p37 = scmp.ne.s32.totalorder %s23, %s24
    %p38 = scmp.eq.s32.totalorder %s16, 1
    %p39 = por %p37, %p38
    %p41 = scmp.ne.s32.totalorder %s24, %s40
    %p42 = scmp.eq.s32.totalorder %s16, 0
    %p43 = por %p41, %p42
    %s45 = sadd.s32 %s44, 1
    %p48 = scmp.eq.s32.totalorder %s10, 1
    %p49 = scmp.ne.s32.totalorder %s44, %s46
    %p50 = scmp.eq.s32.totalorder %s10, 0
    %p51 = por %p49, %p50
    %p52 = scmp.ne.s32.totalorder %s44, %s46
    %p53 = scmp.eq.s32.totalorder %s15, 1
    %p54 = por %p52, %p53
    %p55 = scmp.ne.s32.totalorder %s46, %s47
    %p56 = scmp.eq.s32.totalorder %s15, 0
    %p57 = por %p55, %p56
    %p58 = scmp.ne.s32.totalorder %s46, %s47
    %p59 = scmp.eq.s32.totalorder %s16, 1
    %p60 = por %p58, %p59
    %p62 = scmp.ne.s32.totalorder %s47, %s61
    %p63 = scmp.eq.s32.totalorder %s16, 0
    %p64 = por %p62, %p63
    %s66 = sadd.s32 %s65, 1
    %p69 = scmp.eq.s32.totalorder %s10, 1
    %p70 = scmp.ne.s32.totalorder %s65, %s67
    %p71 = scmp.eq.s32.totalorder %s10, 0
    %p72 = por %p70, %p71
    %p73 = scmp.ne.s32.totalorder %s65, %s67
    %p74 = scmp.eq.s32.totalorder %s15, 1
    %p75 = por %p73, %p74
    %p76 = scmp.ne.s32.totalorder %s67, %s68
    %p77 = scmp.eq.s32.totalorder %s15, 0
    %p78 = por %p76, %p77
    %p79 = scmp.ne.s32.totalorder %s67, %s68
    %p80 = scmp.eq.s32.totalorder %s16, 1
    %p81 = por %p79, %p80
    %p83 = scmp.ne.s32.totalorder %s68, %s82
    %p84 = scmp.eq.s32.totalorder %s16, 0
    %p85 = por %p83, %p84
    %s87 = sadd.s32 %s86, 1
    %p90 = scmp.eq.s32.totalorder %s10, 1
    %p91 = scmp.ne.s32.totalorder %s86, %s88
    %p92 = scmp.eq.s32.totalorder %s10, 0
    %p93 = por %p91, %p92
    %p94 = scmp.ne.s32.totalorder %s86, %s88
    %p95 = scmp.eq.s32.totalorder %s15, 1
    %p96 = por %p94, %p95
    %p97 = scmp.ne.s32.totalorder %s88, %s89
    %p98 = scmp.eq.s32.totalorder %s15, 0
    %p99 = por %p97, %p98
    %p100 = scmp.ne.s32.totalorder %s88, %s89
    %p101 = scmp.eq.s32.totalorder %s16, 1
    %p102 = por %p100, %p101
    %p104 = scmp.ne.s32.totalorder %s89, %s103
    %p105 = scmp.eq.s32.totalorder %s16, 0
    %p106 = por %p104, %p105
    %s107 = ssub.s32 %s10, %s17
    %p108 = scmp.eq.s32.totalorder %s107, 0
    %s110 = sadd.s32 %s109, 1
    %s111 = scalar_select %p108, %s109, %s110
    %p114 = pneg %p108
    %p115 = scmp.eq.s32.totalorder %s10, 1
    %p116 = por %p114, %p115
    %p117 = scmp.ne.s32.totalorder %s109, %s112
    %p118 = scmp.eq.s32.totalorder %s10, 0
    %p119 = por %p117, %p118
    %p120 = scmp.ne.s32.totalorder %s109, %s112
    %p121 = scmp.eq.s32.totalorder %s15, 1
    %p122 = por %p120, %p121
    %p123 = scmp.ne.s32.totalorder %s112, %s113
    %p124 = scmp.eq.s32.totalorder %s15, 0
    %p125 = por %p123, %p124
    %p126 = scmp.ne.s32.totalorder %s112, %s113
    %p127 = scmp.eq.s32.totalorder %s16, 1
    %p128 = por %p126, %p127
    %p130 = scmp.ne.s32.totalorder %s113, %s129
    %p131 = scmp.eq.s32.totalorder %s16, 0
    %p132 = por %p130, %p131
    %p133 = scmp.le.s32.totalorder 1, %s10
    %p134 = scmp.lt.s32.totalorder %s10, 3
    %p135 = pnand %p133, %p134
    %p136 = pneg %p135
    // Predicated region
    $region9: #{tpu_custom_call.1} parent=5 // pred_check
      _
    $region10: #{tpu_custom_call.1} parent=5 // pred_check_branch
      %138 = sbr.rel (%p135) target = $region12
    $region11: #{tpu_custom_call.1} parent=5 // pred_region
      %s139 = ssub.s32 %s10, 1
      // Predicated region
      $region13: #{tpu_custom_call.1} parent=11 // pred_check
        %p140 = pneg %p57
      $region14: #{tpu_custom_call.1} parent=11 // pred_check_branch
        %142 = sbr.rel (%p140) target = $region16
      $region15: #{tpu_custom_call.1} parent=11 // pred_region
        _
      $region16: #{tpu_custom_call.1} parent=11 // pred_fallthru
        _
      // Predicated region
      $region17: #{tpu_custom_call.1} parent=11 // pred_check
        %p143 = pneg %p78
      $region18: #{tpu_custom_call.1} parent=11 // pred_check_branch
        %145 = sbr.rel (%p143) target = $region20
      $region19: #{tpu_custom_call.1} parent=11 // pred_region
        _
      $region20: #{tpu_custom_call.1} parent=11 // pred_fallthru
        _
      // Predicated region
      $region21: #{tpu_custom_call.1} parent=11 // pred_check
        %p146 = pneg %p99
      $region22: #{tpu_custom_call.1} parent=11 // pred_check_branch
        %148 = sbr.rel (%p146) target = $region24
      $region23: #{tpu_custom_call.1} parent=11 // pred_region
        _
      $region24: #{tpu_custom_call.1} parent=11 // pred_fallthru
        _
    $region12: #{tpu_custom_call.1} parent=5 // pred_fallthru
      _
    %p149 = scmp.lt.s32.totalorder %s10, 2
    // Predicated region
    $region25: #{tpu_custom_call.1} parent=5 // pred_check
      %p150 = pneg %p149
    $region26: #{tpu_custom_call.1} parent=5 // pred_check_branch
      %152 = sbr.rel (%p150) target = $region28
    $region27: #{tpu_custom_call.1} parent=5 // pred_region
      // Predicated region
      $region29: #{tpu_custom_call.1} parent=27 // pred_check
        %p153 = pneg %p30
      $region30: #{tpu_custom_call.1} parent=27 // pred_check_branch
        %155 = sbr.rel (%p153) target = $region32
      $region31: #{tpu_custom_call.1} parent=27 // pred_region
        %p156 = scmp.lt.s32.totalorder %s10, 1
        %s157 = scalar_select %p156, %s10, 1
        %s158 = smul.addr %s157, 16
        %s159 = smul.addr %s158, 8
        %s160 = scalar_lea.vmem %s0, %s159
      $region32: #{tpu_custom_call.1} parent=27 // pred_fallthru
        _
    $region28: #{tpu_custom_call.1} parent=5 // pred_fallthru
      _
    %p161 = scmp.le.s32.totalorder 1, %s10
    %p162 = scmp.lt.s32.totalorder %s10, 3
    %p163 = pnand %p161, %p162
    %p164 = pneg %p163
    // Predicated region
    $region33: #{tpu_custom_call.1} parent=5 // pred_check
      _
    $region34: #{tpu_custom_call.1} parent=5 // pred_check_branch
      %166 = sbr.rel (%p163) target = $region36
    $region35: #{tpu_custom_call.1} parent=5 // pred_region
      %s167 = ssub.s32 %s10, 1
      %p168 = scmp.lt.s32.totalorder %s15, 1
      %s169 = scalar_select %p168, %s15, 1
      %s170 = smul.addr %s169, 16
      %s171 = smul.addr %s170, 8
      %s172 = scalar_lea.vmem %s0, %s171
      %p173 = pneg %p36
      %p174 = pneg %p33
      %p175 = pneg %p57
      %p176 = pneg %p54
      %p177 = pneg %p78
      %p178 = pneg %p75
      %p179 = pneg %p99
      %p180 = pneg %p96
      %p181 = pneg %p125
      %p182 = pneg %p122
      %p183 = scmp.lt.s32.totalorder %s15, 1
      %s184 = scalar_select %p183, %s15, 1
      %s185 = smul.addr %s184, 8
      %s186 = scalar_lea.vmem %s4, %s185
      %p187 = scmp.lt.s32.totalorder %s15, 1
      %s188 = scalar_select %p187, %s15, 1
      %s189 = smul.addr %s188, 16
      %s190 = smul.addr %s189, 8
      %s191 = scalar_lea.vmem %s0, %s190
      %p192 = scmp.lt.s32.totalorder %s15, 1
      %s193 = scalar_select %p192, %s15, 1
      %s194 = smul.addr %s193, 8
      %s195 = scalar_lea.vmem %s4, %s194
      %v196 = vld [vmem:[%s191] sm:$0xff]
      %v197 = vld [vmem:[%s191 + $0x8] sm:$0xff]
      %v198 = vld [vmem:[%s191 + $0x10] sm:$0xff]
      %v199 = vld [vmem:[%s191 + $0x18] sm:$0xff]
      %v200 = vld [vmem:[%s191 + $0x20] sm:$0xff]
      %v201 = vld [vmem:[%s191 + $0x28] sm:$0xff]
      %v202 = vld [vmem:[%s191 + $0x30] sm:$0xff]
      %v203 = vld [vmem:[%s191 + $0x38] sm:$0xff]
      %v204 = vld [vmem:[%s3] sm:$0xf]
      %v205 = vld [vmem:[%s1] sm:$0xff]
      %v206 = vld [vmem:[%s1 + $0x8] sm:$0xff]
      %v207 = vld [vmem:[%s1 + $0x10] sm:$0xff]
      %v208 = vld [vmem:[%s1 + $0x18] sm:$0xff]
      %v209 = vld [vmem:[%s1 + $0x20] sm:$0xff]
      %v210 = vld [vmem:[%s1 + $0x28] sm:$0xff]
      %v211 = vld [vmem:[%s1 + $0x30] sm:$0xff]
      %v212 = vld [vmem:[%s1 + $0x38] sm:$0xff]
      %v213 = vld [vmem:[%s1 + $0x40] sm:$0xff]
      %v214 = vld [vmem:[%s1 + $0x48] sm:$0xff]
      %v215 = vld [vmem:[%s1 + $0x50] sm:$0xff]
      %v216 = vld [vmem:[%s1 + $0x58] sm:$0xff]
      %v217 = vld [vmem:[%s1 + $0x60] sm:$0xff]
      %v218 = vld [vmem:[%s1 + $0x68] sm:$0xff]
      %v219 = vld [vmem:[%s1 + $0x70] sm:$0xff]
      %v220 = vld [vmem:[%s1 + $0x78] sm:$0xff]
      %v221 = vld [vmem:[%s1 + $0x80] sm:$0xff]
      %v222 = vld [vmem:[%s1 + $0x88] sm:$0xff]
      %v223 = vld [vmem:[%s1 + $0x90] sm:$0xff]
      %v224 = vld [vmem:[%s1 + $0x98] sm:$0xff]
      %v225 = vld [vmem:[%s1 + $0xa0] sm:$0xff]
      %v226 = vld [vmem:[%s1 + $0xa8] sm:$0xff]
      %v227 = vld [vmem:[%s1 + $0xb0] sm:$0xff]
      %v228 = vld [vmem:[%s1 + $0xb8] sm:$0xff]
      %v229 = vld [vmem:[%s1 + $0xc0] sm:$0xff]
      %v230 = vld [vmem:[%s1 + $0xc8] sm:$0xff]
      %v231 = vld [vmem:[%s1 + $0xd0] sm:$0xff]
      %v232 = vld [vmem:[%s1 + $0xd8] sm:$0xff]
      %v233 = vld [vmem:[%s1 + $0xe0] sm:$0xff]
      %v234 = vld [vmem:[%s1 + $0xe8] sm:$0xff]
      %v235 = vld [vmem:[%s1 + $0xf0] sm:$0xff]
      %v236 = vld [vmem:[%s1 + $0xf8] sm:$0xff]
      %v237 = vld [vmem:[%s1 + $0x100] sm:$0xff]
      %v238 = vld [vmem:[%s1 + $0x108] sm:$0xff]
      %v239 = vld [vmem:[%s1 + $0x110] sm:$0xff]
      %v240 = vld [vmem:[%s1 + $0x118] sm:$0xff]
      %v241 = vld [vmem:[%s1 + $0x120] sm:$0xff]
      %v242 = vld [vmem:[%s1 + $0x128] sm:$0xff]
      %v243 = vld [vmem:[%s1 + $0x130] sm:$0xff]
      %v244 = vld [vmem:[%s1 + $0x138] sm:$0xff]
      %v245 = vld [vmem:[%s1 + $0x140] sm:$0xff]
      %v246 = vld [vmem:[%s1 + $0x148] sm:$0xff]
      %v247 = vld [vmem:[%s1 + $0x150] sm:$0xff]
      %v248 = vld [vmem:[%s1 + $0x158] sm:$0xff]
      %v249 = vld [vmem:[%s1 + $0x160] sm:$0xff]
      %v250 = vld [vmem:[%s1 + $0x168] sm:$0xff]
      %v251 = vld [vmem:[%s1 + $0x170] sm:$0xff]
      %v252 = vld [vmem:[%s1 + $0x178] sm:$0xff]
      %v253 = vld [vmem:[%s1 + $0x180] sm:$0xff]
      %v254 = vld [vmem:[%s1 + $0x188] sm:$0xff]
      %v255 = vld [vmem:[%s1 + $0x190] sm:$0xff]
      %v256 = vld [vmem:[%s1 + $0x198] sm:$0xff]
      %v257 = vld [vmem:[%s1 + $0x1a0] sm:$0xff]
      %v258 = vld [vmem:[%s1 + $0x1a8] sm:$0xff]
      %v259 = vld [vmem:[%s1 + $0x1b0] sm:$0xff]
      %v260 = vld [vmem:[%s1 + $0x1b8] sm:$0xff]
      %v261 = vld [vmem:[%s1 + $0x1c0] sm:$0xff]
      %v262 = vld [vmem:[%s1 + $0x1c8] sm:$0xff]
      %v263 = vld [vmem:[%s1 + $0x1d0] sm:$0xff]
      %v264 = vld [vmem:[%s1 + $0x1d8] sm:$0xff]
      %v265 = vld [vmem:[%s1 + $0x1e0] sm:$0xff]
      %v266 = vld [vmem:[%s1 + $0x1e8] sm:$0xff]
      %v267 = vld [vmem:[%s1 + $0x1f0] sm:$0xff]
      %v268 = vld [vmem:[%s1 + $0x1f8] sm:$0xff]
      %v269 = vld [vmem:[%s1 + $0x200] sm:$0xff]
      %v270 = vld [vmem:[%s1 + $0x208] sm:$0xff]
      %v271 = vld [vmem:[%s1 + $0x210] sm:$0xff]
      %v272 = vld [vmem:[%s1 + $0x218] sm:$0xff]
      %v273 = vld [vmem:[%s1 + $0x220] sm:$0xff]
      %v274 = vld [vmem:[%s1 + $0x228] sm:$0xff]
      %v275 = vld [vmem:[%s1 + $0x230] sm:$0xff]
      %v276 = vld [vmem:[%s1 + $0x238] sm:$0xff]
      %v277 = vld [vmem:[%s1 + $0x240] sm:$0xff]
      %v278 = vld [vmem:[%s1 + $0x248] sm:$0xff]
      %v279 = vld [vmem:[%s1 + $0x250] sm:$0xff]
      %v280 = vld [vmem:[%s1 + $0x258] sm:$0xff]
      %v281 = vld [vmem:[%s1 + $0x260] sm:$0xff]
      %v282 = vld [vmem:[%s1 + $0x268] sm:$0xff]
      %v283 = vld [vmem:[%s1 + $0x270] sm:$0xff]
      %v284 = vld [vmem:[%s1 + $0x278] sm:$0xff]
      %v285 = vld [vmem:[%s1 + $0x280] sm:$0xff]
      %v286 = vld [vmem:[%s1 + $0x288] sm:$0xff]
      %v287 = vld [vmem:[%s1 + $0x290] sm:$0xff]
      %v288 = vld [vmem:[%s1 + $0x298] sm:$0xff]
      %v289 = vld [vmem:[%s1 + $0x2a0] sm:$0xff]
      %v290 = vld [vmem:[%s1 + $0x2a8] sm:$0xff]
      %v291 = vld [vmem:[%s1 + $0x2b0] sm:$0xff]
      %v292 = vld [vmem:[%s1 + $0x2b8] sm:$0xff]
      %v293 = vld [vmem:[%s1 + $0x2c0] sm:$0xff]
      %v294 = vld [vmem:[%s1 + $0x2c8] sm:$0xff]
      %v295 = vld [vmem:[%s1 + $0x2d0] sm:$0xff]
      %v296 = vld [vmem:[%s1 + $0x2d8] sm:$0xff]
      %v297 = vld [vmem:[%s1 + $0x2e0] sm:$0xff]
      %v298 = vld [vmem:[%s1 + $0x2e8] sm:$0xff]
      %v299 = vld [vmem:[%s1 + $0x2f0] sm:$0xff]
      %v300 = vld [vmem:[%s1 + $0x2f8] sm:$0xff]
      %v301 = vld [vmem:[%s1 + $0x300] sm:$0xff]
      %v302 = vld [vmem:[%s1 + $0x308] sm:$0xff]
      %v303 = vld [vmem:[%s1 + $0x310] sm:$0xff]
      %v304 = vld [vmem:[%s1 + $0x318] sm:$0xff]
      %v305 = vld [vmem:[%s1 + $0x320] sm:$0xff]
      %v306 = vld [vmem:[%s1 + $0x328] sm:$0xff]
      %v307 = vld [vmem:[%s1 + $0x330] sm:$0xff]
      %v308 = vld [vmem:[%s1 + $0x338] sm:$0xff]
      %v309 = vld [vmem:[%s1 + $0x340] sm:$0xff]
      %v310 = vld [vmem:[%s1 + $0x348] sm:$0xff]
      %v311 = vld [vmem:[%s1 + $0x350] sm:$0xff]
      %v312 = vld [vmem:[%s1 + $0x358] sm:$0xff]
      %v313 = vld [vmem:[%s1 + $0x360] sm:$0xff]
      %v314 = vld [vmem:[%s1 + $0x368] sm:$0xff]
      %v315 = vld [vmem:[%s1 + $0x370] sm:$0xff]
      %v316 = vld [vmem:[%s1 + $0x378] sm:$0xff]
      %v317 = vld [vmem:[%s1 + $0x380] sm:$0xff]
      %v318 = vld [vmem:[%s1 + $0x388] sm:$0xff]
      %v319 = vld [vmem:[%s1 + $0x390] sm:$0xff]
      %v320 = vld [vmem:[%s1 + $0x398] sm:$0xff]
      %v321 = vld [vmem:[%s1 + $0x3a0] sm:$0xff]
      %v322 = vld [vmem:[%s1 + $0x3a8] sm:$0xff]
      %v323 = vld [vmem:[%s1 + $0x3b0] sm:$0xff]
      %v324 = vld [vmem:[%s1 + $0x3b8] sm:$0xff]
      %v325 = vld [vmem:[%s1 + $0x3c0] sm:$0xff]
      %v326 = vld [vmem:[%s1 + $0x3c8] sm:$0xff]
      %v327 = vld [vmem:[%s1 + $0x3d0] sm:$0xff]
      %v328 = vld [vmem:[%s1 + $0x3d8] sm:$0xff]
      %v329 = vld [vmem:[%s1 + $0x3e0] sm:$0xff]
      %v330 = vld [vmem:[%s1 + $0x3e8] sm:$0xff]
      %v331 = vld [vmem:[%s1 + $0x3f0] sm:$0xff]
      %v332 = vld [vmem:[%s1 + $0x3f8] sm:$0xff]
      %v333 = vperm.slane %v204, 0
      %334 = vmatpush.msra.mxu0 %v220
      %335 = vmatpush.msra.mxu0 %v219
      %336 = vmatpush.msra.mxu0 %v218
      %337 = vmatpush.msra.mxu0 %v217
      %338 = vmatpush.msra.mxu0 %v216
      %339 = vmatpush.msra.mxu0 %v215
      %340 = vmatpush.msra.mxu0 %v214
      %341 = vmatpush.msra.mxu0 %v213
      %342 = vmatpush.msra.mxu0 %v212
      %343 = vmatpush.msra.mxu0 %v211
      %344 = vmatpush.msra.mxu0 %v210
      %345 = vmatpush.msra.mxu0 %v209
      %346 = vmatpush.msra.mxu0 %v208
      %347 = vmatpush.msra.mxu0 %v207
      %348 = vmatpush.msra.mxu0 %v206
      %349 = vmatpush.msra.mxu0 %v205
      %350 = vmatmul.f32.gmra.mxu0 %v196
      %v351 = vpop.f32.mrf.mxu0
      %v352 = vadd.f32 %v333, %v351
      %353 = vdwg.mxu0
      %354 = vmatpush.msra.mxu0 %v236
      %355 = vmatpush.msra.mxu0 %v235
      %356 = vmatpush.msra.mxu0 %v234
      %357 = vmatpush.msra.mxu0 %v233
      %358 = vmatpush.msra.mxu0 %v232
      %359 = vmatpush.msra.mxu0 %v231
      %360 = vmatpush.msra.mxu0 %v230
      %361 = vmatpush.msra.mxu0 %v229
      %362 = vmatpush.msra.mxu0 %v228
      %363 = vmatpush.msra.mxu0 %v227
      %364 = vmatpush.msra.mxu0 %v226
      %365 = vmatpush.msra.mxu0 %v225
      %366 = vmatpush.msra.mxu0 %v224
      %367 = vmatpush.msra.mxu0 %v223
      %368 = vmatpush.msra.mxu0 %v222
      %369 = vmatpush.msra.mxu0 %v221
      %370 = vmatmul.f32.gmra.mxu0 %v197
      %v371 = vpop.f32.mrf.mxu0
      %v372 = vadd.f32 %v352, %v371
      %373 = vdwg.mxu0
      %374 = vmatpush.msra.mxu0 %v252
      %375 = vmatpush.msra.mxu0 %v251
      %376 = vmatpush.msra.mxu0 %v250
      %377 = vmatpush.msra.mxu0 %v249
      %378 = vmatpush.msra.mxu0 %v248
      %379 = vmatpush.msra.mxu0 %v247
      %380 = vmatpush.msra.mxu0 %v246
      %381 = vmatpush.msra.mxu0 %v245
      %382 = vmatpush.msra.mxu0 %v244
      %383 = vmatpush.msra.mxu0 %v243
      %384 = vmatpush.msra.mxu0 %v242
      %385 = vmatpush.msra.mxu0 %v241
      %386 = vmatpush.msra.mxu0 %v240
      %387 = vmatpush.msra.mxu0 %v239
      %388 = vmatpush.msra.mxu0 %v238
      %389 = vmatpush.msra.mxu0 %v237
      %390 = vmatmul.f32.gmra.mxu0 %v198
      %v391 = vpop.f32.mrf.mxu0
      %v392 = vadd.f32 %v372, %v391
      %393 = vdwg.mxu0
      %394 = vmatpush.msra.mxu0 %v268
      %395 = vmatpush.msra.mxu0 %v267
      %396 = vmatpush.msra.mxu0 %v266
      %397 = vmatpush.msra.mxu0 %v265
      %398 = vmatpush.msra.mxu0 %v264
      %399 = vmatpush.msra.mxu0 %v263
      %400 = vmatpush.msra.mxu0 %v262
      %401 = vmatpush.msra.mxu0 %v261
      %402 = vmatpush.msra.mxu0 %v260
      %403 = vmatpush.msra.mxu0 %v259
      %404 = vmatpush.msra.mxu0 %v258
      %405 = vmatpush.msra.mxu0 %v257
      %406 = vmatpush.msra.mxu0 %v256
      %407 = vmatpush.msra.mxu0 %v255
      %408 = vmatpush.msra.mxu0 %v254
      %409 = vmatpush.msra.mxu0 %v253
      %410 = vmatmul.f32.gmra.mxu0 %v199
      %v411 = vpop.f32.mrf.mxu0
      %v412 = vadd.f32 %v392, %v411
      %413 = vdwg.mxu0
      %414 = vmatpush.msra.mxu0 %v284
      %415 = vmatpush.msra.mxu0 %v283
      %416 = vmatpush.msra.mxu0 %v282
      %417 = vmatpush.msra.mxu0 %v281
      %418 = vmatpush.msra.mxu0 %v280
      %419 = vmatpush.msra.mxu0 %v279
      %420 = vmatpush.msra.mxu0 %v278
      %421 = vmatpush.msra.mxu0 %v277
      %422 = vmatpush.msra.mxu0 %v276
      %423 = vmatpush.msra.mxu0 %v275
      %424 = vmatpush.msra.mxu0 %v274
      %425 = vmatpush.msra.mxu0 %v273
      %426 = vmatpush.msra.mxu0 %v272
      %427 = vmatpush.msra.mxu0 %v271
      %428 = vmatpush.msra.mxu0 %v270
      %429 = vmatpush.msra.mxu0 %v269
      %430 = vmatmul.f32.gmra.mxu0 %v200
      %v431 = vpop.f32.mrf.mxu0
      %v432 = vadd.f32 %v412, %v431
      %433 = vdwg.mxu0
      %434 = vmatpush.msra.mxu0 %v300
      %435 = vmatpush.msra.mxu0 %v299
      %436 = vmatpush.msra.mxu0 %v298
      %437 = vmatpush.msra.mxu0 %v297
      %438 = vmatpush.msra.mxu0 %v296
      %439 = vmatpush.msra.mxu0 %v295
      %440 = vmatpush.msra.mxu0 %v294
      %441 = vmatpush.msra.mxu0 %v293
      %442 = vmatpush.msra.mxu0 %v292
      %443 = vmatpush.msra.mxu0 %v291
      %444 = vmatpush.msra.mxu0 %v290
      %445 = vmatpush.msra.mxu0 %v289
      %446 = vmatpush.msra.mxu0 %v288
      %447 = vmatpush.msra.mxu0 %v287
      %448 = vmatpush.msra.mxu0 %v286
      %449 = vmatpush.msra.mxu0 %v285
      %450 = vmatmul.f32.gmra.mxu0 %v201
      %v451 = vpop.f32.mrf.mxu0
      %v452 = vadd.f32 %v432, %v451
      %453 = vdwg.mxu0
      %454 = vmatpush.msra.mxu0 %v316
      %455 = vmatpush.msra.mxu0 %v315
      %456 = vmatpush.msra.mxu0 %v314
      %457 = vmatpush.msra.mxu0 %v313
      %458 = vmatpush.msra.mxu0 %v312
      %459 = vmatpush.msra.mxu0 %v311
      %460 = vmatpush.msra.mxu0 %v310
      %461 = vmatpush.msra.mxu0 %v309
      %462 = vmatpush.msra.mxu0 %v308
      %463 = vmatpush.msra.mxu0 %v307
      %464 = vmatpush.msra.mxu0 %v306
      %465 = vmatpush.msra.mxu0 %v305
      %466 = vmatpush.msra.mxu0 %v304
      %467 = vmatpush.msra.mxu0 %v303
      %468 = vmatpush.msra.mxu0 %v302
      %469 = vmatpush.msra.mxu0 %v301
      %470 = vmatmul.f32.gmra.mxu0 %v202
      %v471 = vpop.f32.mrf.mxu0
      %v472 = vadd.f32 %v452, %v471
      %473 = vdwg.mxu0
      %474 = vmatpush.msra.mxu0 %v332
      %475 = vmatpush.msra.mxu0 %v331
      %476 = vmatpush.msra.mxu0 %v330
      %477 = vmatpush.msra.mxu0 %v329
      %478 = vmatpush.msra.mxu0 %v328
      %479 = vmatpush.msra.mxu0 %v327
      %480 = vmatpush.msra.mxu0 %v326
      %481 = vmatpush.msra.mxu0 %v325
      %482 = vmatpush.msra.mxu0 %v324
      %483 = vmatpush.msra.mxu0 %v323
      %484 = vmatpush.msra.mxu0 %v322
      %485 = vmatpush.msra.mxu0 %v321
      %486 = vmatpush.msra.mxu0 %v320
      %487 = vmatpush.msra.mxu0 %v319
      %488 = vmatpush.msra.mxu0 %v318
      %489 = vmatpush.msra.mxu0 %v317
      %490 = vmatmul.f32.gmra.mxu0 %v203
      %v491 = vpop.f32.mrf.mxu0
      %v492 = vadd.f32 %v472, %v491
      %493 = vdwg.mxu0
      %v494 = vmax.f32 %v492, 0.0
      %v495 = vld [vmem:[%s2] sm:$0xff]
      %v496 = vld [vmem:[%s2 + $0x8] sm:$0xff]
      %v497 = vld [vmem:[%s2 + $0x10] sm:$0xff]
      %v498 = vld [vmem:[%s2 + $0x18] sm:$0xff]
      %v499 = vperm.slane %v204, 1
      %vm500 = vcmask 261120
      %v502 = vsel %vm500, %v494, 0
      %504 = vmatpush.msra.mxu0 0.0
      %505 = vmatpush.msra.mxu0 0.0
      %506 = vmatpush.msra.mxu0 0.0
      %507 = vmatpush.msra.mxu0 0.0
      %508 = vmatpush.msra.mxu0 0.0
      %509 = vmatpush.msra.mxu0 0.0
      %510 = vmatpush.msra.mxu0 0.0
      %511 = vmatpush.msra.mxu0 0.0
      %512 = vmatpush.msra.mxu0 0.0
      %513 = vmatpush.msra.mxu0 0.0
      %514 = vmatpush.msra.mxu0 0.0
      %515 = vmatpush.msra.mxu0 0.0
      %516 = vmatpush.msra.mxu0 %v498
      %517 = vmatpush.msra.mxu0 %v497
      %518 = vmatpush.msra.mxu0 %v496
      %519 = vmatpush.msra.mxu0 %v495
      %520 = vmatmul.f32.gmra.mxu0 %v502
      %v521 = vpop.f32.mrf.mxu0
      %v522 = vadd.f32 %v499, %v521
      %523 = vdwg.mxu0
      %v524 = vmax.f32 %v522, 0.0
      %v525 = vperm.slane %v204, 2
      %v526 = vmul.f32 %v524, %v525
      %v527 = vsel %vm500, %v526, 0.0
      %528 = vadd.xlane.f32.xlu0 %v527
      %v529 = vpop.xlane.xlu0 %528
      %v530 = vperm.slane %v204, 3
      %v531 = vadd.f32 %v529, %v530
      %vm532 = vcmask 7168
      %533 = vst.msk [vmem:[%s195] sm:$0xff] %vm532, %v531
      %p534 = scmp.lt.s32.totalorder %s15, 1
      %s535 = scalar_select %p534, %s15, 1
      %s536 = smul.addr %s535, 8
      %s537 = scalar_lea.vmem %s4, %s536
      // Predicated region
      $region37: #{tpu_custom_call.1} parent=35 // pred_check
        %p538 = pneg %p122
      $region38: #{tpu_custom_call.1} parent=35 // pred_check_branch
        %540 = sbr.rel (%p538) target = $region40
      $region39: #{tpu_custom_call.1} parent=35 // pred_region
        _
      $region40: #{tpu_custom_call.1} parent=35 // pred_fallthru
        _
    $region36: #{tpu_custom_call.1} parent=5 // pred_fallthru
      _
    %p541 = scmp.le.s32.totalorder 2, %s10
    // Predicated region
    $region41: #{tpu_custom_call.1} parent=5 // pred_check
      %p542 = pneg %p541
    $region42: #{tpu_custom_call.1} parent=5 // pred_check_branch
      %544 = sbr.rel (%p542) target = $region44
    $region43: #{tpu_custom_call.1} parent=5 // pred_region
      %s545 = ssub.s32 %s10, 2
      // Predicated region
      $region45: #{tpu_custom_call.1} parent=43 // pred_check
        %p546 = pneg %p128
      $region46: #{tpu_custom_call.1} parent=43 // pred_check_branch
        %548 = sbr.rel (%p546) target = $region48
      $region47: #{tpu_custom_call.1} parent=43 // pred_region
        %p549 = scmp.lt.s32.totalorder %s16, 1
        %s550 = scalar_select %p549, %s16, 1
        %s551 = smul.addr %s550, 8
        %s552 = scalar_lea.vmem %s4, %s551
      $region48: #{tpu_custom_call.1} parent=43 // pred_fallthru
        _
    $region44: #{tpu_custom_call.1} parent=5 // pred_fallthru
      _
  $region6: #{tpu_custom_call.1} parent=0 // loop_footer
    %s14 = sadd.s32 1, %s10
  $region7: #{tpu_custom_call.1} parent=0 // loop_footer_branch
    %9 = sbr.rel target = $region3
  $region8: #{tpu_custom_call.1} parent=0 // loop_exit
    _

</llo_original>
